<compile_context>
chip_gen: v7x
topology: tpu7x:2x2x1
jax: 0.10.0
libtpu: 0.0.40
codegen_flags: <defaults>
</compile_context>

<pallas_src>
import functools

import jax
import jax.numpy as jnp
from jax import lax
from jax.experimental import pallas as pl
from jax.experimental.pallas import tpu as pltpu

LANE = 128
SUBLANE = 8
MAX_BLOCK_ROWS = 2048  # 2048 * 128 * 4B = 1 MiB per f32 block


def _dropout_kernel(seed_ref, x_ref, o_ref, *, thresh, multiplier, block_rows):
    # Global element index of every lane in this tile (counter for the hash).
    pid = pl.program_id(0)
    base = pid * (block_rows * LANE)
    row_ids = lax.broadcasted_iota(jnp.int32, (block_rows, LANE), 0)
    col_ids = lax.broadcasted_iota(jnp.int32, (block_rows, LANE), 1)
    idx = (base + row_ids * LANE + col_ids).astype(jnp.uint32)

    # Stateless counter-based RNG: murmur3 fmix32 of (index ^ seed*golden).
    seed_u = seed_ref[0].astype(jnp.uint32)
    h = idx ^ (seed_u * jnp.uint32(0x9E3779B9))
    h = h ^ (h >> 16)
    h = h * jnp.uint32(0x85EBCA6B)
    h = h ^ (h >> 13)
    h = h * jnp.uint32(0xC2B2AE35)
    h = h ^ (h >> 16)

    # selected_ = uniform > p  <=>  bits >= uint32(p * 2^32); keep prob = 1 - p.
    keep = h >= jnp.uint32(thresh)
    scaled = x_ref[...] * jnp.asarray(multiplier, dtype=x_ref.dtype)
    o_ref[...] = jnp.where(keep, scaled, jnp.zeros_like(scaled))


def new_dropout(x, seed, p=0.5, training=True):
    """Matches NewDropout.forward: identity in eval, mask * x * (1/(1-p)) in train."""
    if not training:
        return x
    if p >= 1.0:
        return jnp.zeros_like(x)          # multiplier_ == 0.0 path
    if p <= 0.0:
        return x                          # keep everything, multiplier == 1.0

    multiplier = 1.0 / (1.0 - p)
    thresh = min(max(int(round(p * (1 << 32))), 0), (1 << 32) - 1)

    orig_shape = x.shape
    n = x.size

    # Lane-dense 2D slab. Only pad when numel is not a multiple of (8 * 128).
    tile_elems = SUBLANE * LANE
    padded = (n % tile_elems) != 0
    if padded:
        n_pad = ((n + tile_elems - 1) // tile_elems) * tile_elems
        flat = jnp.pad(jnp.ravel(x), (0, n_pad - n))
    else:
        n_pad = n
        flat = jnp.ravel(x)
    rows = n_pad // LANE
    slab = flat.reshape(rows, LANE)

    block_rows = min(MAX_BLOCK_ROWS, rows)      # rows is a multiple of 8 here
    num_tiles = -(-rows // block_rows)

    seed_arr = jnp.asarray([seed], dtype=jnp.int32)
    kernel = functools.partial(
        _dropout_kernel, thresh=thresh, multiplier=multiplier, block_rows=block_rows
    )

    out = pl.pallas_call(
        kernel,
        out_shape=jax.ShapeDtypeStruct(slab.shape, slab.dtype),
        grid_spec=pltpu.PrefetchScalarGridSpec(
            num_scalar_prefetch=1,
            grid=(num_tiles,),
            in_specs=[
                pl.BlockSpec((block_rows, LANE), lambda i, seed_ref: (i, 0)),
            ],
            out_specs=pl.BlockSpec((block_rows, LANE), lambda i, seed_ref: (i, 0)),
        ),
        compiler_params=pltpu.CompilerParams(
            dimension_semantics=("parallel",),   # hash is stateless per element
            vmem_limit_bytes=32 * 1024 * 1024,   # safe on v5e/v6e/v7x
        ),
        cost_estimate=pl.CostEstimate(
            flops=2 * n,
            transcendentals=0,
            bytes_accessed=2 * n * x.dtype.itemsize,
        ),
    )(seed_arr, slab)

    if padded:
        out = out.reshape(-1)[:n]
    return out.reshape(orig_shape)


if __name__ == "__main__":
    key = jax.random.PRNGKey(0)
    x = jax.random.normal(key, (2, 4, 16, 16), dtype=jnp.float32)  # NCHW-like input

    p = 0.5
    y = new_dropout(x, seed=1234, p=p, training=True)
    y = jax.block_until_ready(y)

    # Sanity checks on dropout semantics.
    assert y.shape == x.shape and y.dtype == x.dtype
    kept = y != 0
    multiplier = 1.0 / (1.0 - p)
    # Kept elements must equal x * multiplier exactly.
    assert jnp.allclose(
        jnp.where(kept, y, 0.0),
        jnp.where(kept, x * multiplier, 0.0),
        rtol=1e-6,
        atol=1e-6,
    )
    # Roughly half the elements should be kept (loose bound).
    keep_frac = jnp.mean(kept.astype(jnp.float32))
    assert 0.3 < float(keep_frac) < 0.7, f"unexpected keep fraction {keep_frac}"

    # Determinism: same seed -> same mask.
    y2 = jax.block_until_ready(new_dropout(x, seed=1234, p=p, training=True))
    assert jnp.array_equal(y, y2)

    # Eval mode is identity.
    y_eval = jax.block_until_ready(new_dropout(x, seed=1234, p=p, training=False))
    assert jnp.array_equal(y_eval, x)

    print("KERNEL_OK")
</pallas_src>

<mosaic_0001>
module attributes {stable_mosaic.version = 11 : i64} {
  func.func @_dropout_kernel(%arg0: i32, %arg1: memref<1xi32, #tpu.memory_space<smem>>, %arg2: memref<16x128xf32, #tpu.memory_space<vmem>>, %arg3: memref<16x128xf32, #tpu.memory_space<vmem>>) attributes {dimension_semantics = [#tpu.dimension_semantics<parallel>], iteration_bounds = array<i64: 1>, scalar_prefetch = 1 : i64, scratch_operands = 0 : i64, tpu.core_type = #tpu.core_type<tc>, window_params = [{transform_indices = @transform_0, window_bounds = array<i64: 16, 128>}, {transform_indices = @transform_1, window_bounds = array<i64: 16, 128>}]} {
    %c2048_i32 = arith.constant 2048 : i32
    %0 = arith.muli %arg0, %c2048_i32 : i32
    %1 = tpu.iota {dimensions = array<i32: 0>} : vector<16x128xi32>
    %2 = tpu.iota {dimensions = array<i32: 1>} : vector<16x128xi32>
    %c128_i32 = arith.constant 128 : i32
    %3 = vector.broadcast %c128_i32 : i32 to vector<16x128xi32>
    %4 = arith.muli %1, %3 : vector<16x128xi32>
    %5 = vector.broadcast %0 : i32 to vector<16x128xi32>
    %6 = arith.addi %5, %4 : vector<16x128xi32>
    %7 = arith.addi %6, %2 : vector<16x128xi32>
    %c0 = arith.constant 0 : index
    %8 = memref.load %arg1[%c0] : memref<1xi32, #tpu.memory_space<smem>>
    %c-1640531527_i32 = arith.constant -1640531527 : i32
    %9 = arith.muli %8, %c-1640531527_i32 : i32
    %10 = vector.broadcast %9 : i32 to vector<16x128xi32>
    %11 = arith.xori %7, %10 : vector<16x128xi32>
    %c16_i32 = arith.constant 16 : i32
    %12 = vector.broadcast %c16_i32 : i32 to vector<16x128xi32>
    %13 = arith.shrui %11, %12 : vector<16x128xi32>
    %14 = arith.xori %11, %13 : vector<16x128xi32>
    %c-2048144789_i32 = arith.constant -2048144789 : i32
    %15 = vector.broadcast %c-2048144789_i32 : i32 to vector<16x128xi32>
    %16 = arith.muli %14, %15 : vector<16x128xi32>
    %c13_i32 = arith.constant 13 : i32
    %17 = vector.broadcast %c13_i32 : i32 to vector<16x128xi32>
    %18 = arith.shrui %16, %17 : vector<16x128xi32>
    %19 = arith.xori %16, %18 : vector<16x128xi32>
    %c-1028477387_i32 = arith.constant -1028477387 : i32
    %20 = vector.broadcast %c-1028477387_i32 : i32 to vector<16x128xi32>
    %21 = arith.muli %19, %20 : vector<16x128xi32>
    %c16_i32_0 = arith.constant 16 : i32
    %22 = vector.broadcast %c16_i32_0 : i32 to vector<16x128xi32>
    %23 = arith.shrui %21, %22 : vector<16x128xi32>
    %24 = arith.xori %21, %23 : vector<16x128xi32>
    %c-2147483648_i32 = arith.constant -2147483648 : i32
    %25 = vector.broadcast %c-2147483648_i32 : i32 to vector<16x128xi32>
    %26 = arith.cmpi uge, %24, %25 : vector<16x128xi32>
    %c0_1 = arith.constant 0 : index
    %c0_2 = arith.constant 0 : index
    %27 = vector.load %arg2[%c0_1, %c0_2] : memref<16x128xf32, #tpu.memory_space<vmem>>, vector<16x128xf32>
    %cst = arith.constant 2.000000e+00 : f32
    %28 = vector.broadcast %cst : f32 to vector<16x128xf32>
    %29 = arith.mulf %27, %28 : vector<16x128xf32>
    %cst_3 = arith.constant 0.000000e+00 : f32
    %30 = vector.broadcast %cst_3 : f32 to vector<16x128xf32>
    %31 = arith.select %26, %29, %30 : vector<16x128xi1>, vector<16x128xf32>
    %c0_4 = arith.constant 0 : index
    %c0_5 = arith.constant 0 : index
    %32 = vector.load %arg3[%c0_4, %c0_5] : memref<16x128xf32, #tpu.memory_space<vmem>>, vector<16x128xf32>
    tpu.vector_store %arg3[%c0_4, %c0_5], %31 {strides = array<i32>} : memref<16x128xf32, #tpu.memory_space<vmem>>, vector<16x128xf32>,
    return
  }
  func.func @transform_0(%arg0: i32, %arg1: memref<1xi32, #tpu.memory_space<smem>>) -> (i32, i32) {
    %c0_i32 = arith.constant 0 : i32
    %c0_i32_0 = arith.constant 0 : i32
    return %arg0, %c0_i32 : i32, i32
  }
  func.func @transform_1(%arg0: i32, %arg1: memref<1xi32, #tpu.memory_space<smem>>) -> (i32, i32) {
    %c0_i32 = arith.constant 0 : i32
    %c0_i32_0 = arith.constant 0 : i32
    return %arg0, %c0_i32 : i32, i32
  }
}

</mosaic_0001>

<llo_original>
// kernel: tpu_custom_call.1
$region0: #{tpu_custom_call.1}
  #allocation0 [shape = 'u32[]', space=smem, size = 0x4, offset = 0x4, fixed_abs, tag = 'smem constant byte address 0x4 - core index']
  #allocation1 [shape = 'u32[144,128]{1,0:T(1,128)}', space=vmem, size = 0x12000, scoped, tag = 'internal scratch']
  #allocation2 [shape = 's32[1]{0}', space=sflag, size = 0x4, scoped, tag = 'scoped memory for tpu_custom_call.1']
  #allocation3 [shape = 's32[1]{0:T(128)S(6)}', space=smem, size = 0x200, scoped, tag = 'prefetched SMEM operand 0']
  %s0 = inlined_call_operand.<no memory space> [shape: s32[1], index: 0, kind: input, shape index: {}]
  %s1 = inlined_call_operand.hbm [shape: f32[16,128], index: 1, kind: input, shape index: {}]
  %s2 = inlined_call_operand.hbm [shape: f32[16,128], index: 2, kind: output, shape index: {}]
  %s3 = sld [smem:[#allocation0]]
  $region18: #{tpu_custom_call.1} parent=0
    _
  %s5 = ssub.s32 1, %s3
  %s6 = scalar_select 0, %s5, %s3
  %7 = sst [smem:[#allocation3]] %s0
  $region1: #{tpu_custom_call.1} parent=0
    #allocation4 [shape = 'u8[8192]{0}', space=vmem, size = 0x2000, scoped, tag = 'input window, operand 1, single buffered']
    #allocation5 [shape = 's32[1]{0}', space=sflag, size = 0x4, scoped, tag = 'scoped memory for tpu_custom_call.1']
    #allocation6 [shape = 's32[1]{0}', space=sflag, size = 0x4, scoped, tag = 'scoped memory for tpu_custom_call.1']
    #allocation7 [shape = 'u8[8192]{0}', space=vmem, size = 0x2000, scoped, tag = 'output window, operand 0, single buffered']
    %8 = vsyncpa [#allocation5], 0
    %9 = vsyncpa [#allocation6], 0
    // Predicated region
    $region2: #{tpu_custom_call.1} parent=1 // pred_check
      _
    $region3: #{tpu_custom_call.1} parent=1 // pred_check_branch
      %11 = sbr.rel (0) target = $region5
    $region4: #{tpu_custom_call.1} parent=1 // pred_region
      %s13 = ssub.s32 256, 256
      %14 = vsyncadd [#allocation5], %s13
      %s15 = sshll.u32 [#allocation4], 4
      %s16 = int_to_ptr.vmem [resolvable:$true] %s15
      %21 = dma.hbm_to_vmem [thread:$0]  %s1, 256, %s16, [#allocation5], 128, 128, 8
    $region5: #{tpu_custom_call.1} parent=1 // pred_fallthru
      _
    // Predicated region
    $region6: #{tpu_custom_call.1} parent=1 // pred_check
      _
    $region7: #{tpu_custom_call.1} parent=1 // pred_check_branch
      %23 = sbr.rel (0) target = $region9
    $region8: #{tpu_custom_call.1} parent=1 // pred_region
      %24 = dma.done [#allocation5], 256
    $region9: #{tpu_custom_call.1} parent=1 // pred_fallthru
      _
    %s25 = smul.u32 0, 2048
    %v26 = vlaneseq
    %v27 = vshrl.u32 %v26, 7
    %v28 = vadd.s32 %v27, 8
    %v29 = vlaneseq
    %v30 = vand.u32 %v29, 127
    %v31 = vmul.u32 %v27, 128
    %v32 = vmul.u32 %v28, 128
    %v33 = vstv %s25
    %v34 = vadd.s32 %v33, %v31
    %v35 = vadd.s32 %v33, %v32
    %v36 = vadd.s32 %v34, %v30
    %v37 = vadd.s32 %v35, %v30
    %s38 = sld [smem:[#allocation3]]
    %s39 = smul.u32 %s38, 2654435769
    %v40 = vstv %s39
    %v41 = vxor.u32 %v36, %v40
    %v42 = vxor.u32 %v37, %v40
    %v43 = vshrl.u32 %v41, 16
    %v44 = vshrl.u32 %v42, 16
    %v45 = vxor.u32 %v41, %v43
    %v46 = vxor.u32 %v42, %v44
    %v47 = vmul.u32 %v45, 2246822507
    %v48 = vmul.u32 %v46, 2246822507
    %v49 = vshrl.u32 %v47, 13
    %v50 = vshrl.u32 %v48, 13
    %v51 = vxor.u32 %v47, %v49
    %v52 = vxor.u32 %v48, %v50
    %v53 = vmul.u32 %v51, 3266489909
    %v54 = vmul.u32 %v52, 3266489909
    %v55 = vshrl.u32 %v53, 16
    %v56 = vshrl.u32 %v54, 16
    %v57 = vxor.u32 %v53, %v55
    %v58 = vxor.u32 %v54, %v56
    %vm59 = vcmp.ge.u32.totalorder %v57, 2147483648
    %vm60 = vcmp.ge.u32.totalorder %v58, 2147483648
    %v61 = vld [vmem:[#allocation4] sm:$0xff]
    %v62 = vld [vmem:[#allocation4 + $0x8] sm:$0xff]
    %v63 = vmul.f32 %v61, 2.0
    %v64 = vmul.f32 %v62, 2.0
    %v65 = vsel %vm59, %v63, 0.0
    %v66 = vsel %vm60, %v64, 0.0
    %67 = vst [vmem:[#allocation7] sm:$0xff] %v65
    %68 = vst [vmem:[#allocation7 + $0x8] sm:$0xff] %v66
    // Predicated region
    $region10: #{tpu_custom_call.1} parent=1 // pred_check
      _
    $region11: #{tpu_custom_call.1} parent=1 // pred_check_branch
      %70 = sbr.rel (0) target = $region13
    $region12: #{tpu_custom_call.1} parent=1 // pred_region
      %s72 = ssub.s32 256, 256
      %73 = vsyncadd [#allocation6], %s72
      %s74 = sshll.u32 [#allocation7], 4
      %s75 = int_to_ptr.vmem [resolvable:$true] %s74
      %80 = dma.vmem_to_hbm [thread:$0]  %s75, 256, %s2, [#allocation6], 128, 128, 8
    $region13: #{tpu_custom_call.1} parent=1 // pred_fallthru
      _
    // Predicated region
    $region14: #{tpu_custom_call.1} parent=1 // pred_check
      _
    $region15: #{tpu_custom_call.1} parent=1 // pred_check_branch
      %82 = sbr.rel (0) target = $region17
    $region16: #{tpu_custom_call.1} parent=1 // pred_region
      %83 = dma.done [#allocation6], 256
    $region17: #{tpu_custom_call.1} parent=1 // pred_fallthru
      _
    %84 = vsyncpa [#allocation5], 1
    %85 = vsyncpa [#allocation6], 1

</llo_original>
